<compile_context>
chip_gen: v5e
topology: v5e:2x2
jax: 0.10.0
libtpu: 0.0.40
codegen_flags: <defaults>
</compile_context>

<pallas_src>
import math

import jax
import jax.numpy as jnp
from jax.experimental import pallas as pl
from jax.experimental.pallas import tpu as pltpu


# ----------------------------- helpers ------------------------------------ #

def _round_up(n, m):
    return ((n + m - 1) // m) * m


def _pad_dim(a, axis, target):
    cur = a.shape[axis]
    if cur == target:
        return a
    widths = [(0, 0)] * a.ndim
    widths[axis] = (0, target - cur)
    return jnp.pad(a, widths)


# ------------------------------ kernel ------------------------------------ #

def _make_fused_mlp_kernel(approx_recip):
    """One (batch, layer) grid step: z = h @ W_l + b_l, optional activation mix.

    Refs:
      x_ref : (S_p, D_p)   bf16  input (resident across the layer axis)
      w_ref : (D_p, D_p)   bf16  weights of layer `l`
      p_ref : (4,  D_p)    f32   [bias ; a0*mask ; a1*mask ; a2*mask]
      o_ref : (S_p, D_p)   f32   output (written only at the last layer)
      h_ref : (S_p, D_p)   bf16  persistent activation scratch
    """

    def kernel(x_ref, w_ref, p_ref, o_ref, h_ref):
        l = pl.program_id(1)
        n_layers = pl.num_programs(1)

        @pl.when(l == 0)
        def _():
            h_ref[...] = x_ref[...].astype(h_ref.dtype)

        w = w_ref[...]
        p = p_ref[...]

        # MXU matmul, f32 accumulation.
        z = jnp.dot(h_ref[...], w, preferred_element_type=jnp.float32)
        z = z + p[0:1, :]                       # bias row

        @pl.when(l < n_layers - 1)
        def _():
            # Activation mixture with a single EUP exp:
            #   u = exp(-|z|)
            #   sigmoid(|z|) = 1 / (1 + u)
            #   tanh(|z|)    = (1 - u^2) / (1 + u^2)
            # reflected by sign(z); denominators via (approx) reciprocal.
            az = jnp.abs(z)
            u = jnp.exp(-az)                    # in (0, 1]
            u2 = u * u
            sig_pos = pl.reciprocal(1.0 + u, approx=approx_recip)
            tanh_pos = (1.0 - u2) * pl.reciprocal(1.0 + u2, approx=approx_recip)
            nonneg = z >= 0
            sig = jnp.where(nonneg, sig_pos, 1.0 - sig_pos)
            th = jnp.where(nonneg, tanh_pos, -tanh_pos)
            lrelu = jnp.where(z > 0, z, 0.01 * z)

            # Mask is pre-folded into the coefficient rows -> no extra multiply.
            act = p[1:2, :] * sig + p[2:3, :] * th + p[3:4, :] * lrelu
            h_ref[...] = act.astype(h_ref.dtype)

        @pl.when(l == n_layers - 1)
        def _():
            o_ref[...] = z.astype(o_ref.dtype)

    return kernel


# ----------------------------- wrapper ------------------------------------ #

def mlp_forward(x, fc_weights, output_weight, biases, activate_masks,
                activations_func, *, matmul_dtype=jnp.bfloat16,
                approx_recip=True):
    """Pallas implementation of MLP.forward (single fused kernel).

    x               : (B, S, input_size)
    fc_weights      : list of (B, Din_i, hidden)
    output_weight   : (B, hidden, output_size)
    biases          : list; biases[i] is (B, hidden), biases[-1] is (B, output)
    activate_masks  : (B, hidden, num_hidden_layers)
    activations_func: list of (B, hidden, 3)
    """
    B, S, Din = x.shape
    L = len(fc_weights)
    Dh = fc_weights[0].shape[2]
    Dout = output_weight.shape[2]

    # One common padded feature dim so every layer's weights share a BlockSpec.
    in_dims = [Din] + [fc_weights[i].shape[1] for i in range(1, L)]
    D_p = max([_round_up(d, 128) for d in in_dims + [Dh, Dout]])
    # bf16 sublane pack -> pad the sequence dim to a multiple of 16.
    S_p = _round_up(S, 16)

    # Input, zero-padded and cast to the MXU dtype.
    x_p = _pad_dim(_pad_dim(x, 1, S_p), 2, D_p).astype(matmul_dtype)

    # Stack all L+1 weight matrices into (B, L+1, D_p, D_p).
    w_list = []
    for i in range(L):
        w_list.append(_pad_dim(_pad_dim(fc_weights[i], 1, D_p), 2, D_p))
    w_list.append(_pad_dim(_pad_dim(output_weight, 1, D_p), 2, D_p))
    w_stack = jnp.stack(w_list, axis=1).astype(matmul_dtype)

    # Per-layer parameter slab (B, L+1, 4, D_p):
    #   row 0 = bias, rows 1..3 = softmax mixture coefficients * activation mask
    # (mask folded into the coefficients; output layer uses zero coefficients).
    p_list = []
    for i in range(L):
        a_sm = jax.nn.softmax(activations_func[i].astype(jnp.float32), axis=-1)
        mask = activate_masks[:, :, i].astype(jnp.float32)          # (B, Dh)
        coef = jnp.transpose(a_sm, (0, 2, 1)) * mask[:, None, :]    # (B, 3, Dh)
        p = jnp.concatenate(
            [biases[i][:, None, :].astype(jnp.float32), coef], axis=1)
        p_list.append(_pad_dim(p, 2, D_p))
    p_out = jnp.concatenate(
        [_pad_dim(biases[-1][:, None, :].astype(jnp.float32), 2, D_p),
         jnp.zeros((B, 3, D_p), jnp.float32)], axis=1)
    p_list.append(p_out)
    p_stack = jnp.stack(p_list, axis=1)                              # (B,L+1,4,D_p)

    # Cost estimate (advisory): MXU flops + exp + 2 approx reciprocals.
    flops = 2 * B * (L + 1) * S_p * D_p * D_p
    transcendentals = 3 * B * L * S_p * D_p
    bytes_accessed = (
        math.prod(x_p.shape) * x_p.dtype.itemsize
        + math.prod(w_stack.shape) * w_stack.dtype.itemsize
        + math.prod(p_stack.shape) * p_stack.dtype.itemsize
        + B * S_p * D_p * 4)

    out_p = pl.pallas_call(
        _make_fused_mlp_kernel(approx_recip),
        out_shape=jax.ShapeDtypeStruct((B, S_p, D_p), jnp.float32),
        grid=(B, L + 1),
        in_specs=[
            # x: resident across the layer axis (same block index for all l).
            pl.BlockSpec((None, S_p, D_p), lambda b, l: (b, 0, 0)),
            # Weights: one layer per grid step, auto double-buffered.
            pl.BlockSpec((None, None, D_p, D_p), lambda b, l: (b, l, 0, 0)),
            # Bias + (masked) mixture coefficients for this layer.
            pl.BlockSpec((None, None, 4, D_p), lambda b, l: (b, l, 0, 0)),
        ],
        out_specs=pl.BlockSpec((None, S_p, D_p), lambda b, l: (b, 0, 0)),
        scratch_shapes=[pltpu.VMEM((S_p, D_p), matmul_dtype)],
        compiler_params=pltpu.CompilerParams(
            dimension_semantics=("parallel", "arbitrary"),
            # Explicit budget: stays well under v7x's 64 MiB physical VMEM and
            # above the 16/32 MiB scoped defaults for production-ish sizes.
            vmem_limit_bytes=48 * 1024 * 1024),
        cost_estimate=pl.CostEstimate(
            flops=flops,
            transcendentals=transcendentals,
            bytes_accessed=bytes_accessed),
    )(x_p, w_stack, p_stack)

    return out_p[:, :S, :Dout]


# ------------------------ pure-JAX reference ------------------------------- #

def mlp_reference(x, fc_weights, output_weight, biases, activate_masks,
                  activations_func):
    for i, w in enumerate(fc_weights):
        mask = activate_masks[:, :, i][:, None, :]
        b = biases[i][:, None, :]
        a = jax.nn.softmax(activations_func[i], axis=-1)
        z = jnp.matmul(x, w) + b
        act = (a[:, None, :, 0] * jax.nn.sigmoid(z)
               + a[:, None, :, 1] * jnp.tanh(z)
               + a[:, None, :, 2] * jnp.where(z > 0, z, 0.01 * z))
        x = act * mask
    return jnp.matmul(x, output_weight) + biases[-1][:, None, :]


# -------------------------------- main ------------------------------------ #

if __name__ == "__main__":
    # Small, deterministic problem consistent with the module's forward.
    B, S = 2, 8
    input_size, hidden_size, output_size = 8, 32, 4
    num_hidden_layers = 2

    key = jax.random.PRNGKey(0)
    keys = jax.random.split(key, 16)
    ki = iter(keys)

    x = jax.random.normal(next(ki), (B, S, input_size), dtype=jnp.float32)

    # custom_weights: num_hidden_layers hidden weights + 1 output weight
    fc_weights = []
    d_in = input_size
    for _ in range(num_hidden_layers):
        fc_weights.append(
            0.1 * jax.random.normal(next(ki), (B, d_in, hidden_size),
                                    dtype=jnp.float32))
        d_in = hidden_size
    output_weight = 0.1 * jax.random.normal(
        next(ki), (B, hidden_size, output_size), dtype=jnp.float32)

    # biases: one per hidden layer (B, hidden) + final (B, output)
    biases = [0.1 * jax.random.normal(next(ki), (B, hidden_size),
                                      dtype=jnp.float32)
              for _ in range(num_hidden_layers)]
    biases.append(0.1 * jax.random.normal(next(ki), (B, output_size),
                                          dtype=jnp.float32))

    # activation mixture logits: one per hidden layer, (B, hidden, 3)
    activations_func = [jax.random.normal(next(ki), (B, hidden_size, 3),
                                          dtype=jnp.float32)
                        for _ in range(num_hidden_layers)]

    # binary activation masks: (B, hidden, num_hidden_layers)
    activate_masks = (jax.random.uniform(
        next(ki), (B, hidden_size, num_hidden_layers)) > 0.3
    ).astype(jnp.float32)

    out = mlp_forward(x, fc_weights, output_weight, biases, activate_masks,
                      activations_func)
    out = jax.block_until_ready(out)

    ref = mlp_reference(x, fc_weights, output_weight, biases, activate_masks,
                        activations_func)
    ref = jax.block_until_ready(ref)

    assert out.shape == (B, S, output_size), out.shape
    err = float(jnp.max(jnp.abs(out - ref)))
    # bf16 MXU inputs / bf16 activation carry + approx reciprocals
    # => loosened tolerance vs the f32 reference.
    assert err < 5e-2, f"max abs err = {err}"

    print("KERNEL_OK")
</pallas_src>

<mosaic_0001>
module attributes {stable_mosaic.version = 11 : i64} {
  func.func @kernel(%arg0: i32, %arg1: i32, %arg2: memref<1x16x128xbf16, #tpu.memory_space<vmem>>, %arg3: memref<1x1x128x128xbf16, #tpu.memory_space<vmem>>, %arg4: memref<1x1x4x128xf32, #tpu.memory_space<vmem>>, %arg5: memref<1x16x128xf32, #tpu.memory_space<vmem>>, %arg6: memref<16x128xbf16, #tpu.memory_space<vmem>>) attributes {dimension_semantics = [#tpu.dimension_semantics<parallel>, #tpu.dimension_semantics<arbitrary>], iteration_bounds = array<i64: 2, 3>, scalar_prefetch = 0 : i64, scratch_operands = 1 : i64, tpu.core_type = #tpu.core_type<tc>, window_params = [{transform_indices = @transform_0, window_bounds = array<i64: 1, 16, 128>}, {transform_indices = @transform_1, window_bounds = array<i64: 1, 1, 128, 128>}, {transform_indices = @transform_2, window_bounds = array<i64: 1, 1, 4, 128>}, {transform_indices = @transform_3, window_bounds = array<i64: 1, 16, 128>}]} {
    %c0_i32 = arith.constant 0 : i32
    %0 = arith.cmpi eq, %arg1, %c0_i32 : i32
    %1 = arith.extui %0 : i1 to i32
    %c0_i32_0 = arith.constant 0 : i32
    %2 = arith.cmpi ne, %1, %c0_i32_0 : i32
    scf.if %2 {
      %c0_13 = arith.constant 0 : index
      %c0_14 = arith.constant 0 : index
      %c0_15 = arith.constant 0 : index
      %18 = vector.load %arg2[%c0_13, %c0_14, %c0_15] : memref<1x16x128xbf16, #tpu.memory_space<vmem>>, vector<1x16x128xbf16>
      %19 = vector.shape_cast %18 : vector<1x16x128xbf16> to vector<16x128xbf16>
      %c0_16 = arith.constant 0 : index
      %c0_17 = arith.constant 0 : index
      %20 = vector.load %arg6[%c0_16, %c0_17] : memref<16x128xbf16, #tpu.memory_space<vmem>>, vector<16x128xbf16>
      tpu.vector_store %arg6[%c0_16, %c0_17], %19 {strides = array<i32>} : memref<16x128xbf16, #tpu.memory_space<vmem>>, vector<16x128xbf16>,
    } else {
    }
    %c0 = arith.constant 0 : index
    %c0_1 = arith.constant 0 : index
    %c0_2 = arith.constant 0 : index
    %c0_3 = arith.constant 0 : index
    %3 = vector.load %arg3[%c0, %c0_1, %c0_2, %c0_3] : memref<1x1x128x128xbf16, #tpu.memory_space<vmem>>, vector<1x1x128x128xbf16>
    %4 = vector.shape_cast %3 : vector<1x1x128x128xbf16> to vector<128x128xbf16>
    %c0_4 = arith.constant 0 : index
    %c0_5 = arith.constant 0 : index
    %c0_6 = arith.constant 0 : index
    %c0_7 = arith.constant 0 : index
    %5 = vector.load %arg4[%c0_4, %c0_5, %c0_6, %c0_7] : memref<1x1x4x128xf32, #tpu.memory_space<vmem>>, vector<1x1x4x128xf32>
    %6 = vector.shape_cast %5 : vector<1x1x4x128xf32> to vector<4x128xf32>
    %c0_8 = arith.constant 0 : index
    %c0_9 = arith.constant 0 : index
    %7 = vector.load %arg6[%c0_8, %c0_9] : memref<16x128xbf16, #tpu.memory_space<vmem>>, vector<16x128xbf16>
    %cst = arith.constant dense<0.000000e+00> : vector<16x128xf32>
    %8 = tpu.matmul %7, %4, %cst {dimension_numbers = #tpu.dot_dimension_numbers<[1], [0], [0], [1], [0, 0, 1, 1], [], []>} : vector<16x128xbf16>, vector<128x128xbf16>, vector<16x128xf32> -> vector<16x128xf32>
    %9 = vector.extract_strided_slice %6 {offsets = [0, 0], sizes = [1, 128], strides = [1, 1]} : vector<4x128xf32> to vector<1x128xf32>
    %10 = vector.broadcast %9 : vector<1x128xf32> to vector<16x128xf32>
    %11 = arith.addf %8, %10 : vector<16x128xf32>
    %c2_i32 = arith.constant 2 : i32
    %12 = arith.cmpi slt, %arg1, %c2_i32 : i32
    %13 = arith.extui %12 : i1 to i32
    %c0_i32_10 = arith.constant 0 : i32
    %14 = arith.cmpi ne, %13, %c0_i32_10 : i32
    scf.if %14 {
      %18 = math.absf %11 : vector<16x128xf32>
      %cst_13 = arith.constant 0.000000e+00 : f32
      %19 = vector.broadcast %cst_13 : f32 to vector<16x128xf32>
      %20 = arith.subf %19, %18 : vector<16x128xf32>
      %21 = math.exp %20 : vector<16x128xf32>
      %22 = arith.mulf %21, %21 : vector<16x128xf32>
      %cst_14 = arith.constant 1.000000e+00 : f32
      %23 = vector.broadcast %cst_14 : f32 to vector<16x128xf32>
      %24 = arith.addf %23, %21 : vector<16x128xf32>
      %25 = tpu.reciprocal %24 {approx = true} : vector<16x128xf32> -> vector<16x128xf32>
      %cst_15 = arith.constant 1.000000e+00 : f32
      %26 = vector.broadcast %cst_15 : f32 to vector<16x128xf32>
      %27 = arith.subf %26, %22 : vector<16x128xf32>
      %cst_16 = arith.constant 1.000000e+00 : f32
      %28 = vector.broadcast %cst_16 : f32 to vector<16x128xf32>
      %29 = arith.addf %28, %22 : vector<16x128xf32>
      %30 = tpu.reciprocal %29 {approx = true} : vector<16x128xf32> -> vector<16x128xf32>
      %31 = arith.mulf %27, %30 : vector<16x128xf32>
      %cst_17 = arith.constant 0.000000e+00 : f32
      %32 = vector.broadcast %cst_17 : f32 to vector<16x128xf32>
      %33 = arith.cmpf oge, %11, %32 : vector<16x128xf32>
      %cst_18 = arith.constant 1.000000e+00 : f32
      %34 = vector.broadcast %cst_18 : f32 to vector<16x128xf32>
      %35 = arith.subf %34, %25 : vector<16x128xf32>
      %36 = arith.select %33, %25, %35 : vector<16x128xi1>, vector<16x128xf32>
      %cst_19 = arith.constant 0.000000e+00 : f32
      %37 = vector.broadcast %cst_19 : f32 to vector<16x128xf32>
      %38 = arith.subf %37, %31 : vector<16x128xf32>
      %39 = arith.select %33, %31, %38 : vector<16x128xi1>, vector<16x128xf32>
      %cst_20 = arith.constant 0.000000e+00 : f32
      %40 = vector.broadcast %cst_20 : f32 to vector<16x128xf32>
      %41 = arith.cmpf ogt, %11, %40 : vector<16x128xf32>
      %cst_21 = arith.constant 0.00999999977 : f32
      %42 = vector.broadcast %cst_21 : f32 to vector<16x128xf32>
      %43 = arith.mulf %42, %11 : vector<16x128xf32>
      %44 = arith.select %41, %11, %43 : vector<16x128xi1>, vector<16x128xf32>
      %45 = vector.extract_strided_slice %6 {offsets = [1, 0], sizes = [1, 128], strides = [1, 1]} : vector<4x128xf32> to vector<1x128xf32>
      %46 = vector.broadcast %45 : vector<1x128xf32> to vector<16x128xf32>
      %47 = arith.mulf %46, %36 : vector<16x128xf32>
      %48 = vector.extract_strided_slice %6 {offsets = [2, 0], sizes = [1, 128], strides = [1, 1]} : vector<4x128xf32> to vector<1x128xf32>
      %49 = vector.broadcast %48 : vector<1x128xf32> to vector<16x128xf32>
      %50 = arith.mulf %49, %39 : vector<16x128xf32>
      %51 = arith.addf %47, %50 : vector<16x128xf32>
      %52 = vector.extract_strided_slice %6 {offsets = [3, 0], sizes = [1, 128], strides = [1, 1]} : vector<4x128xf32> to vector<1x128xf32>
      %53 = vector.broadcast %52 : vector<1x128xf32> to vector<16x128xf32>
      %54 = arith.mulf %53, %44 : vector<16x128xf32>
      %55 = arith.addf %51, %54 : vector<16x128xf32>
      %56 = arith.truncf %55 : vector<16x128xf32> to vector<16x128xbf16>
      %c0_22 = arith.constant 0 : index
      %c0_23 = arith.constant 0 : index
      %57 = vector.load %arg6[%c0_22, %c0_23] : memref<16x128xbf16, #tpu.memory_space<vmem>>, vector<16x128xbf16>
      tpu.vector_store %arg6[%c0_22, %c0_23], %56 {strides = array<i32>} : memref<16x128xbf16, #tpu.memory_space<vmem>>, vector<16x128xbf16>,
    } else {
    }
    %c2_i32_11 = arith.constant 2 : i32
    %15 = arith.cmpi eq, %arg1, %c2_i32_11 : i32
    %16 = arith.extui %15 : i1 to i32
    %c0_i32_12 = arith.constant 0 : i32
    %17 = arith.cmpi ne, %16, %c0_i32_12 : i32
    scf.if %17 {
      %c0_13 = arith.constant 0 : index
      %c0_14 = arith.constant 0 : index
      %c0_15 = arith.constant 0 : index
      %18 = vector.load %arg5[%c0_13, %c0_14, %c0_15] : memref<1x16x128xf32, #tpu.memory_space<vmem>>, vector<1x16x128xf32>
      %19 = vector.shape_cast %18 : vector<1x16x128xf32> to vector<16x128xf32>
      %20 = vector.shape_cast %11 : vector<16x128xf32> to vector<1x16x128xf32>
      tpu.vector_store %arg5[%c0_13, %c0_14, %c0_15], %20 {strides = array<i32>} : memref<1x16x128xf32, #tpu.memory_space<vmem>>, vector<1x16x128xf32>,
    } else {
    }
    return
  }
  func.func @transform_0(%arg0: i32, %arg1: i32) -> (i32, i32, i32) {
    %c0_i32 = arith.constant 0 : i32
    %c0_i32_0 = arith.constant 0 : i32
    %c0_i32_1 = arith.constant 0 : i32
    return %arg0, %c0_i32, %c0_i32_0 : i32, i32, i32
  }
  func.func @transform_1(%arg0: i32, %arg1: i32) -> (i32, i32, i32, i32) {
    %c0_i32 = arith.constant 0 : i32
    %c0_i32_0 = arith.constant 0 : i32
    %c0_i32_1 = arith.constant 0 : i32
    return %arg0, %arg1, %c0_i32, %c0_i32_0 : i32, i32, i32, i32
  }
  func.func @transform_2(%arg0: i32, %arg1: i32) -> (i32, i32, i32, i32) {
    %c0_i32 = arith.constant 0 : i32
    %c0_i32_0 = arith.constant 0 : i32
    %c0_i32_1 = arith.constant 0 : i32
    return %arg0, %arg1, %c0_i32, %c0_i32_0 : i32, i32, i32, i32
  }
  func.func @transform_3(%arg0: i32, %arg1: i32) -> (i32, i32, i32) {
    %c0_i32 = arith.constant 0 : i32
    %c0_i32_0 = arith.constant 0 : i32
    %c0_i32_1 = arith.constant 0 : i32
    return %arg0, %c0_i32, %c0_i32_0 : i32, i32, i32
  }
}

</mosaic_0001>

<llo_original>
// kernel: tpu_custom_call.1
$region0: #{tpu_custom_call.1}
  #allocation0 [shape = 'u32[]', space=smem, size = 0x4, offset = 0x4, fixed_abs, tag = 'smem constant byte address 0x4 - core index']
  #allocation1 [shape = 'u32[72,128]{1,0:T(1,128)}', space=vmem, size = 0x9000, scoped, tag = 'internal scratch']
  #allocation2 [shape = 'bf16[16,128]{1,0:T(8,128)(2,1)}', space=vmem, size = 0x1000, scoped, tag = 'scratch operand']
  %s0 = inlined_call_operand.hbm [shape: bf16[2,16,128], index: 0, kind: input, shape index: {}]
  %s1 = inlined_call_operand.hbm [shape: bf16[2,3,128,128], index: 1, kind: input, shape index: {}]
  %s2 = inlined_call_operand.hbm [shape: f32[2,3,4,128], index: 2, kind: input, shape index: {}]
  %s3 = inlined_call_operand.hbm [shape: f32[2,16,128], index: 3, kind: output, shape index: {}]
  %s4 = sld [smem:[#allocation0]]
  $region69: #{tpu_custom_call.1} parent=0
    _
  %s6 = ssub.s32 1, %s4
  %s7 = scalar_select 0, %s6, %s4
  $region1: #{tpu_custom_call.1} parent=0
    #allocation3 [shape = 'u8[8192]{0}', space=vmem, size = 0x2000, scoped, tag = 'input window, operand 0']
    #allocation4 [shape = 's32[2]{0}', space=sflag, size = 0x8, scoped, tag = 'scoped memory for tpu_custom_call.1']
    #allocation5 [shape = 's32[2]{0}', space=sflag, size = 0x8, scoped, tag = 'scoped memory for tpu_custom_call.1']
    #allocation6 [shape = 'u8[65536]{0}', space=vmem, size = 0x10000, scoped, tag = 'input window, operand 1']
    #allocation7 [shape = 's32[2]{0}', space=sflag, size = 0x8, scoped, tag = 'scoped memory for tpu_custom_call.1']
    #allocation8 [shape = 'u8[4096]{0}', space=vmem, size = 0x1000, scoped, tag = 'input window, operand 2']
    #allocation9 [shape = 'u8[16384]{0}', space=vmem, size = 0x4000, scoped, tag = 'output window, operand 0']
    %8 = vsyncpa [#allocation4], 0
    %s9 = scalar_lea.sflag [#allocation4], 1
    %10 = vsyncpa %s9, 0
    %11 = vsyncpa [#allocation7], 0
    %s12 = scalar_lea.sflag [#allocation7], 1
    %13 = vsyncpa %s12, 0
    %14 = vsyncpa [#allocation5], 0
    %s15 = scalar_lea.sflag [#allocation5], 1
    %16 = vsyncpa %s15, 0
    loop: start=0, step=1, limit=8
    $region2: #{tpu_custom_call.1} parent=1 // loop_pre_header
      _
    $region3: #{tpu_custom_call.1} parent=1 // loop_header
      %s18 = sphi 0, %s22
      %p19 = scmp.ge.s32.totalorder %s18, 8
      %s25 = sphi 0, %s37
      %s26 = sphi 0, %s33
      %s27 = sphi 0, %s25
      %s28 = sphi 0, %s26
      %s29 = sphi 0, %s27
      %s30 = sphi 0, %s28
      %s40 = sphi 0, %s42
      %s43 = sphi 0, %s40
      %s44 = sphi 0, %s43
      %s60 = sphi 0, %s44
      %s68 = sphi 0, %s70
      %s71 = sphi 0, %s68
      %s72 = sphi 0, %s71
      %s88 = sphi 0, %s72
      %s96 = sphi 0, %s98
      %s99 = sphi 0, %s96
      %s100 = sphi 0, %s99
      %s116 = sphi 0, %s100
      %s122 = sphi 0, %s124
      %s125 = sphi 0, %s122
      %s126 = sphi 0, %s125
      %s142 = sphi 0, %s126
    $region4: #{tpu_custom_call.1} parent=1 // loop_header_branch
      %21 = sbr.rel (%p19) target = $region8
    $region5: #{tpu_custom_call.1} parent=1 // loop_body
      %s23 = ssub.s32 %s18, 1
      %s24 = ssub.s32 %s18, 2
      %s31 = sadd.s32 1, %s26
      %p32 = scmp.ge.s32.totalorder %s31, 3
      %s33 = scalar_select %p32, 0, %s31
      %s34 = sadd.s32 1, %s25
      %s35 = scalar_select %p32, %s34, %s25
      %p36 = scmp.ge.s32.totalorder %s35, 2
      %s37 = scalar_select %p36, 0, %s35
      %s38 = ssub.s32 %s25, %s37
      %p39 = scmp.eq.s32.totalorder %s38, 0
      %s41 = sadd.s32 %s40, 1
      %s42 = scalar_select %p39, %s40, %s41
      %p45 = pneg %p39
      %p46 = scmp.eq.s32.totalorder %s18, 5
      %p47 = por %p45, %p46
      %p48 = scmp.ne.s32.totalorder %s40, %s43
      %p49 = scmp.eq.s32.totalorder %s18, 0
      %p50 = por %p48, %p49
      %p51 = scmp.ne.s32.totalorder %s40, %s43
      %p52 = scmp.eq.s32.totalorder %s23, 5
      %p53 = por %p51, %p52
      %p54 = scmp.ne.s32.totalorder %s43, %s44
      %p55 = scmp.eq.s32.totalorder %s23, 0
      %p56 = por %p54, %p55
      %p57 = scmp.ne.s32.totalorder %s43, %s44
      %p58 = scmp.eq.s32.totalorder %s24, 5
      %p59 = por %p57, %p58
      %p61 = scmp.ne.s32.totalorder %s44, %s60
      %p62 = scmp.eq.s32.totalorder %s24, 0
      %p63 = por %p61, %p62
      %s64 = ssub.s32 %s25, %s37
      %s65 = ssub.s32 %s26, %s33
      %s66 = sor.u32 %s64, %s65
      %p67 = scmp.eq.s32.totalorder %s66, 0
      %s69 = sadd.s32 %s68, 1
      %s70 = scalar_select %p67, %s68, %s69
      %p73 = pneg %p67
      %p74 = scmp.eq.s32.totalorder %s18, 5
      %p75 = por %p73, %p74
      %p76 = scmp.ne.s32.totalorder %s68, %s71
      %p77 = scmp.eq.s32.totalorder %s18, 0
      %p78 = por %p76, %p77
      %p79 = scmp.ne.s32.totalorder %s68, %s71
      %p80 = scmp.eq.s32.totalorder %s23, 5
      %p81 = por %p79, %p80
      %p82 = scmp.ne.s32.totalorder %s71, %s72
      %p83 = scmp.eq.s32.totalorder %s23, 0
      %p84 = por %p82, %p83
      %p85 = scmp.ne.s32.totalorder %s71, %s72
      %p86 = scmp.eq.s32.totalorder %s24, 5
      %p87 = por %p85, %p86
      %p89 = scmp.ne.s32.totalorder %s72, %s88
      %p90 = scmp.eq.s32.totalorder %s24, 0
      %p91 = por %p89, %p90
      %s92 = ssub.s32 %s25, %s37
      %s93 = ssub.s32 %s26, %s33
      %s94 = sor.u32 %s92, %s93
      %p95 = scmp.eq.s32.totalorder %s94, 0
      %s97 = sadd.s32 %s96, 1
      %s98 = scalar_select %p95, %s96, %s97
      %p101 = pneg %p95
      %p102 = scmp.eq.s32.totalorder %s18, 5
      %p103 = por %p101, %p102
      %p104 = scmp.ne.s32.totalorder %s96, %s99
      %p105 = scmp.eq.s32.totalorder %s18, 0
      %p106 = por %p104, %p105
      %p107 = scmp.ne.s32.totalorder %s96, %s99
      %p108 = scmp.eq.s32.totalorder %s23, 5
      %p109 = por %p107, %p108
      %p110 = scmp.ne.s32.totalorder %s99, %s100
      %p111 = scmp.eq.s32.totalorder %s23, 0
      %p112 = por %p110, %p111
      %p113 = scmp.ne.s32.totalorder %s99, %s100
      %p114 = scmp.eq.s32.totalorder %s24, 5
      %p115 = por %p113, %p114
      %p117 = scmp.ne.s32.totalorder %s100, %s116
      %p118 = scmp.eq.s32.totalorder %s24, 0
      %p119 = por %p117, %p118
      %s120 = ssub.s32 %s25, %s37
      %p121 = scmp.eq.s32.totalorder %s120, 0
      %s123 = sadd.s32 %s122, 1
      %s124 = scalar_select %p121, %s122, %s123
      %p127 = pneg %p121
      %p128 = scmp.eq.s32.totalorder %s18, 5
      %p129 = por %p127, %p128
      %p130 = scmp.ne.s32.totalorder %s122, %s125
      %p131 = scmp.eq.s32.totalorder %s18, 0
      %p132 = por %p130, %p131
      %p133 = scmp.ne.s32.totalorder %s122, %s125
      %p134 = scmp.eq.s32.totalorder %s23, 5
      %p135 = por %p133, %p134
      %p136 = scmp.ne.s32.totalorder %s125, %s126
      %p137 = scmp.eq.s32.totalorder %s23, 0
      %p138 = por %p136, %p137
      %p139 = scmp.ne.s32.totalorder %s125, %s126
      %p140 = scmp.eq.s32.totalorder %s24, 5
      %p141 = por %p139, %p140
      %p143 = scmp.ne.s32.totalorder %s126, %s142
      %p144 = scmp.eq.s32.totalorder %s24, 0
      %p145 = por %p143, %p144
      %p146 = scmp.le.s32.totalorder 1, %s18
      %p147 = scmp.lt.s32.totalorder %s18, 7
      %p148 = pnand %p146, %p147
      %p149 = pneg %p148
      // Predicated region
      $region9: #{tpu_custom_call.1} parent=5 // pred_check
        _
      $region10: #{tpu_custom_call.1} parent=5 // pred_check_branch
        %151 = sbr.rel (%p148) target = $region12
      $region11: #{tpu_custom_call.1} parent=5 // pred_region
        %s152 = ssub.s32 %s18, 1
      $region12: #{tpu_custom_call.1} parent=5 // pred_fallthru
        _
      %p153 = scmp.lt.s32.totalorder %s18, 6
      // Predicated region
      $region13: #{tpu_custom_call.1} parent=5 // pred_check
        %p154 = pneg %p153
      $region14: #{tpu_custom_call.1} parent=5 // pred_check_branch
        %156 = sbr.rel (%p154) target = $region16
      $region15: #{tpu_custom_call.1} parent=5 // pred_region
        // Predicated region
        $region17: #{tpu_custom_call.1} parent=15 // pred_check
          %p157 = pneg %p50
        $region18: #{tpu_custom_call.1} parent=15 // pred_check_branch
          %159 = sbr.rel (%p157) target = $region20
        $region19: #{tpu_custom_call.1} parent=15 // pred_region
          %s160 = sand.u32 %s40, 1
          %s161 = scalar_lea.sflag [#allocation4], %s160
          %s162 = sand.u32 %s40, 1
          %s163 = smul.addr %s162, 8
          %s164 = scalar_lea.vmem [#allocation3], %s163
          %166 = vsyncadd %s161, 0
          %s167 = smul.addr %s25, 2
          %s168 = smul.addr %s167, 4
          %s169 = scalar_lea.hbm %s0, %s168
          %s170 = sshll.u32 %s169, 4
          %s171 = int_to_ptr.hbm [resolvable:$true] %s170
          %s172 = sshll.u32 %s164, 4
          %s173 = int_to_ptr.vmem [resolvable:$true] %s172
          %178 = dma.hbm_to_vmem [thread:$0]  %s171, 128, %s173, %s161, 64, 64, 4
        $region20: #{tpu_custom_call.1} parent=15 // pred_fallthru
          _
        // Predicated region
        $region21: #{tpu_custom_call.1} parent=15 // pred_check
          %p179 = pneg %p78
        $region22: #{tpu_custom_call.1} parent=15 // pred_check_branch
          %181 = sbr.rel (%p179) target = $region24
        $region23: #{tpu_custom_call.1} parent=15 // pred_region
          %s182 = sand.u32 %s18, 1
          %s183 = scalar_lea.sflag [#allocation7], %s182
          %s184 = sand.u32 %s68, 1
          %s185 = smul.addr %s184, 64
          %s186 = scalar_lea.vmem [#allocation6], %s185
          %188 = vsyncadd %s183, 0
          %s189 = smul.addr %s26, 16
          %s190 = smul.addr %s25, 48
          %s191 = sadd.s32 %s189, %s190
          %s192 = smul.addr %s191, 4
          %s193 = scalar_lea.hbm %s1, %s192
          %s194 = sshll.u32 %s193, 4
          %s195 = int_to_ptr.hbm [resolvable:$true] %s194
          %s196 = sshll.u32 %s186, 4
          %s197 = int_to_ptr.vmem [resolvable:$true] %s196
          %202 = dma.hbm_to_vmem [thread:$0]  %s195, 1024, %s197, %s183, 64, 64, 4
        $region24: #{tpu_custom_call.1} parent=15 // pred_fallthru
          _
        // Predicated region
        $region25: #{tpu_custom_call.1} parent=15 // pred_check
          %p203 = pneg %p106
        $region26: #{tpu_custom_call.1} parent=15 // pred_check_branch
          %205 = sbr.rel (%p203) target = $region28
        $region27: #{tpu_custom_call.1} parent=15 // pred_region
          %s206 = sand.u32 %s18, 1
          %s207 = scalar_lea.sflag [#allocation7], %s206
          %s208 = sand.u32 %s96, 1
          %s209 = smul.addr %s208, 4
          %s210 = scalar_lea.vmem [#allocation8], %s209
          %212 = vsyncadd %s207, 0
          %s213 = smul.addr %s25, 3
          %s214 = sadd.s32 %s26, %s213
          %s215 = smul.addr %s214, 4
          %s216 = scalar_lea.hbm %s2, %s215
          %s218 = sshll.u32 %s216, 4
          %s219 = int_to_ptr.hbm [resolvable:$true] %s218
          %s220 = sshll.u32 %s210, 4
          %s221 = int_to_ptr.vmem [resolvable:$true] %s220
          %223 = dma.hbm_to_vmem [thread:$0]  %s219, 64, %s221, %s207
        $region28: #{tpu_custom_call.1} parent=15 // pred_fallthru
          _
      $region16: #{tpu_custom_call.1} parent=5 // pred_fallthru
        _
      %p224 = scmp.le.s32.totalorder 1, %s18
      %p225 = scmp.lt.s32.totalorder %s18, 7
      %p226 = pnand %p224, %p225
      %p227 = pneg %p226
      // Predicated region
      $region29: #{tpu_custom_call.1} parent=5 // pred_check
        _
      $region30: #{tpu_custom_call.1} parent=5 // pred_check_branch
        %229 = sbr.rel (%p226) target = $region32
      $region31: #{tpu_custom_call.1} parent=5 // pred_region
        %s230 = ssub.s32 %s18, 1
        %s231 = sand.u32 %s43, 1
        %s232 = scalar_lea.sflag [#allocation4], %s231
        %s233 = sand.u32 %s43, 1
        %s234 = smul.addr %s233, 8
        %s235 = scalar_lea.vmem [#allocation3], %s234
        // Predicated region
        $region33: #{tpu_custom_call.1} parent=31 // pred_check
          %p236 = pneg %p56
        $region34: #{tpu_custom_call.1} parent=31 // pred_check_branch
          %238 = sbr.rel (%p236) target = $region36
        $region35: #{tpu_custom_call.1} parent=31 // pred_region
          %240 = dma.done %s232, 128
        $region36: #{tpu_custom_call.1} parent=31 // pred_fallthru
          _
        %s241 = sand.u32 %s23, 1
        %s242 = scalar_lea.sflag [#allocation7], %s241
        %s243 = sand.u32 %s71, 1
        %s244 = smul.addr %s243, 64
        %s245 = scalar_lea.vmem [#allocation6], %s244
        // Predicated region
        $region37: #{tpu_custom_call.1} parent=31 // pred_check
          %p246 = pneg %p84
        $region38: #{tpu_custom_call.1} parent=31 // pred_check_branch
          %248 = sbr.rel (%p246) target = $region40
        $region39: #{tpu_custom_call.1} parent=31 // pred_region
          %250 = dma.done %s242, 1024
        $region40: #{tpu_custom_call.1} parent=31 // pred_fallthru
          _
        %s251 = sand.u32 %s23, 1
        %s252 = scalar_lea.sflag [#allocation7], %s251
        %s253 = sand.u32 %s99, 1
        %s254 = smul.addr %s253, 4
        %s255 = scalar_lea.vmem [#allocation8], %s254
        // Predicated region
        $region41: #{tpu_custom_call.1} parent=31 // pred_check
          %p256 = pneg %p112
        $region42: #{tpu_custom_call.1} parent=31 // pred_check_branch
          %258 = sbr.rel (%p256) target = $region44
        $region43: #{tpu_custom_call.1} parent=31 // pred_region
          %260 = dma.done %s252, 64
        $region44: #{tpu_custom_call.1} parent=31 // pred_fallthru
          _
        %s261 = sand.u32 %s43, 1
        %s262 = scalar_lea.sflag [#allocation4], %s261
        %s263 = sand.u32 %s43, 1
        %s264 = smul.addr %s263, 8
        %s265 = scalar_lea.vmem [#allocation3], %s264
        %p266 = pneg %p56
        %p267 = pneg %p53
        %s268 = sand.u32 %s23, 1
        %s269 = scalar_lea.sflag [#allocation7], %s268
        %s270 = sand.u32 %s71, 1
        %s271 = smul.addr %s270, 64
        %s272 = scalar_lea.vmem [#allocation6], %s271
        %p273 = pneg %p84
        %p274 = pneg %p81
        %s275 = sand.u32 %s23, 1
        %s276 = scalar_lea.sflag [#allocation7], %s275
        %s277 = sand.u32 %s99, 1
        %s278 = smul.addr %s277, 4
        %s279 = scalar_lea.vmem [#allocation8], %s278
        %p280 = pneg %p112
        %p281 = pneg %p109
        %p282 = pneg %p138
        %p283 = pneg %p135
        %s284 = sand.u32 %s125, 1
        %s285 = scalar_lea.sflag [#allocation5], %s284
        %s286 = sand.u32 %s125, 1
        %s287 = smul.addr %s286, 16
        %s288 = scalar_lea.vmem [#allocation9], %s287
        %p289 = scmp.eq.s32.totalorder %s28, 0
        // Predicated region
        $region45: #{tpu_custom_call.1} parent=31 // pred_check
          %p290 = pneg %p289
        $region46: #{tpu_custom_call.1} parent=31 // pred_check_branch
          %292 = sbr.rel (%p290) target = $region48
        $region47: #{tpu_custom_call.1} parent=31 // pred_region
          %v293 = vld [vmem:[%s235] sm:$0xf]
          %v294 = vld [vmem:[%s235 + $0x4] sm:$0xf]
          %295 = vst [vmem:[#allocation2] sm:$0xf] %v293
          %296 = vst [vmem:[#allocation2 + $0x4] sm:$0xf] %v294
        $region48: #{tpu_custom_call.1} parent=31 // pred_fallthru
          _
        %v297 = vld [vmem:[%s245] sm:$0xf]
        %v298 = vld [vmem:[%s245 + $0x4] sm:$0xf]
        %v299 = vld [vmem:[%s245 + $0x8] sm:$0xf]
        %v300 = vld [vmem:[%s245 + $0xc] sm:$0xf]
        %v301 = vld [vmem:[%s245 + $0x10] sm:$0xf]
        %v302 = vld [vmem:[%s245 + $0x14] sm:$0xf]
        %v303 = vld [vmem:[%s245 + $0x18] sm:$0xf]
        %v304 = vld [vmem:[%s245 + $0x1c] sm:$0xf]
        %v305 = vld [vmem:[%s245 + $0x20] sm:$0xf]
        %v306 = vld [vmem:[%s245 + $0x24] sm:$0xf]
        %v307 = vld [vmem:[%s245 + $0x28] sm:$0xf]
        %v308 = vld [vmem:[%s245 + $0x2c] sm:$0xf]
        %v309 = vld [vmem:[%s245 + $0x30] sm:$0xf]
        %v310 = vld [vmem:[%s245 + $0x34] sm:$0xf]
        %v311 = vld [vmem:[%s245 + $0x38] sm:$0xf]
        %v312 = vld [vmem:[%s245 + $0x3c] sm:$0xf]
        %v313 = vld [vmem:[%s255] sm:$0xf]
        %v314 = vld [vmem:[#allocation2] sm:$0xf]
        %v315 = vld [vmem:[#allocation2 + $0x4] sm:$0xf]
        %v316 = vperm.slane %v313, 0
        %v319 = vunpack.c.l.b16 %v314
        %v320 = vunpack.c.l.b16 %v315
        %v321 = vpack.c.b16 %v320, %v319
        %v339 = vunpack.c.l.b16 %v297
        %v340 = vunpack.c.l.b16 %v298
        %v341 = vunpack.c.l.b16 %v299
        %v342 = vunpack.c.l.b16 %v300
        %v343 = vunpack.c.l.b16 %v301
        %v344 = vunpack.c.l.b16 %v302
        %v345 = vunpack.c.l.b16 %v303
        %v346 = vunpack.c.l.b16 %v304
        %v347 = vunpack.c.l.b16 %v305
        %v348 = vunpack.c.l.b16 %v306
        %v349 = vunpack.c.l.b16 %v307
        %v350 = vunpack.c.l.b16 %v308
        %v351 = vunpack.c.l.b16 %v309
        %v352 = vunpack.c.l.b16 %v310
        %v353 = vunpack.c.l.b16 %v311
        %v354 = vunpack.c.l.b16 %v312
        %v355 = vpack.c.b16 %v340, %v339
        %v356 = vpack.c.b16 %v342, %v341
        %v357 = vpack.c.b16 %v344, %v343
        %v358 = vpack.c.b16 %v346, %v345
        %v359 = vpack.c.b16 %v348, %v347
        %v360 = vpack.c.b16 %v350, %v349
        %v361 = vpack.c.b16 %v352, %v351
        %v362 = vpack.c.b16 %v354, %v353
        %371 = vmatpush.bf16.msra.mxu0 %v362
        %372 = vmatpush.bf16.msra.mxu0 %v361
        %373 = vmatpush.bf16.msra.mxu0 %v360
        %374 = vmatpush.bf16.msra.mxu0 %v359
        %375 = vmatpush.bf16.msra.mxu0 %v358
        %376 = vmatpush.bf16.msra.mxu0 %v357
        %377 = vmatpush.bf16.msra.mxu0 %v356
        %378 = vmatpush.bf16.msra.mxu0 %v355
        %379 = vmatmul.bf16.gmra.mxu0 %v321
        %v380 = vpop.f32.mrf.mxu0
        %v381 = vadd.f32 %v316, %v380
        %v382 = vpop.f32.mrf.mxu0
        %v383 = vadd.f32 %v316, %v382
        %384 = vdwg.mxu0
        %p385 = scmp.lt.s32.totalorder %s28, 2
        // Predicated region
        $region49: #{tpu_custom_call.1} parent=31 // pred_check
          %p386 = pneg %p385
        $region50: #{tpu_custom_call.1} parent=31 // pred_check_branch
          %388 = sbr.rel (%p386) target = $region52
        $region51: #{tpu_custom_call.1} parent=31 // pred_region
          %v389 = vand.u32 2147483647, %v381
          %v390 = vand.u32 2147483647, %v383
          %v391 = vsub.f32 0.0, %v389
          %v392 = vsub.f32 0.0, %v390
          %v393 = vmul.f32 %v391, 1.442695
          %v394 = vpow.pop %v393
          %v395 = vmul.f32 %v392, 1.442695
          %v396 = vpow.pop %v395
          %v397 = vmul.f32 %v394, %v394
          %v398 = vmul.f32 %v396, %v396
          %v399 = vadd.f32 %v394, 1.0
          %v400 = vadd.f32 %v396, 1.0
          %v401 = vrcp.pop %v399
          %v402 = vrcp.pop %v400
          %v403 = vsub.f32 1.0, %v397
          %v404 = vsub.f32 1.0, %v398
          %v405 = vadd.f32 %v397, 1.0
          %v406 = vadd.f32 %v398, 1.0
          %v407 = vrcp.pop %v405
          %v408 = vrcp.pop %v406
          %v409 = vmul.f32 %v403, %v407
          %v410 = vmul.f32 %v404, %v408
          %vm411 = vcmp.ge.f32.partialorder %v381, 0.0
          %vm412 = vcmp.ge.f32.partialorder %v383, 0.0
          %v413 = vsub.f32 1.0, %v401
          %v414 = vsub.f32 1.0, %v402
          %v415 = vsel %vm411, %v401, %v413
          %v416 = vsel %vm412, %v402, %v414
          %v417 = vsub.f32 0.0, %v409
          %v418 = vsub.f32 0.0, %v410
          %v419 = vsel %vm411, %v409, %v417
          %v420 = vsel %vm412, %v410, %v418
          %vm421 = vcmp.gt.f32.partialorder %v381, 0.0
          %vm422 = vcmp.gt.f32.partialorder %v383, 0.0
          %v423 = vmul.f32 %v381, 0.01
          %v424 = vmul.f32 %v383, 0.01
          %v425 = vsel %vm421, %v381, %v423
          %v426 = vsel %vm422, %v383, %v424
          %v427 = vperm.slane %v313, 1
          %v428 = vmul.f32 %v427, %v415
          %v429 = vmul.f32 %v427, %v416
          %v430 = vperm.slane %v313, 2
          %v431 = vmul.f32 %v430, %v419
          %v432 = vmul.f32 %v430, %v420
          %v433 = vadd.f32 %v428, %v431
          %v434 = vadd.f32 %v429, %v432
          %v435 = vperm.slane %v313, 3
          %v436 = vmul.f32 %v435, %v425
          %v437 = vmul.f32 %v435, %v426
          %v438 = vadd.f32 %v433, %v436
          %v439 = vadd.f32 %v434, %v437
          %v440 = vpack.c.bf16 %v438, %v438
          %v441 = vpack.c.bf16 %v439, %v439
          %442 = vst [vmem:[#allocation2] sm:$0xf] %v440
          %443 = vst [vmem:[#allocation2 + $0x4] sm:$0xf] %v441
        $region52: #{tpu_custom_call.1} parent=31 // pred_fallthru
          _
        %p444 = scmp.eq.s32.totalorder %s28, 2
        // Predicated region
        $region53: #{tpu_custom_call.1} parent=31 // pred_check
          %p445 = pneg %p444
        $region54: #{tpu_custom_call.1} parent=31 // pred_check_branch
          %447 = sbr.rel (%p445) target = $region56
        $region55: #{tpu_custom_call.1} parent=31 // pred_region
          %448 = vst [vmem:[%s288] sm:$0xff] %v381
          %449 = vst [vmem:[%s288 + $0x8] sm:$0xff] %v383
        $region56: #{tpu_custom_call.1} parent=31 // pred_fallthru
          _
        %s450 = sand.u32 %s125, 1
        %s451 = scalar_lea.sflag [#allocation5], %s450
        %s452 = sand.u32 %s125, 1
        %s453 = smul.addr %s452, 16
        %s454 = scalar_lea.vmem [#allocation9], %s453
        // Predicated region
        $region57: #{tpu_custom_call.1} parent=31 // pred_check
          %p455 = pneg %p135
        $region58: #{tpu_custom_call.1} parent=31 // pred_check_branch
          %457 = sbr.rel (%p455) target = $region60
        $region59: #{tpu_custom_call.1} parent=31 // pred_region
          %459 = vsyncadd %s451, 0
          %s460 = smul.addr %s27, 2
          %s461 = smul.addr %s460, 8
          %s462 = scalar_lea.hbm %s3, %s461
          %s463 = sshll.u32 %s454, 4
          %s464 = int_to_ptr.vmem [resolvable:$true] %s463
          %s465 = sshll.u32 %s462, 4
          %s466 = int_to_ptr.hbm [resolvable:$true] %s465
          %471 = dma.vmem_to_hbm [thread:$0]  %s464, 256, %s466, %s451, 128, 128, 8
        $region60: #{tpu_custom_call.1} parent=31 // pred_fallthru
          _
      $region32: #{tpu_custom_call.1} parent=5 // pred_fallthru
        _
      %p472 = scmp.le.s32.totalorder 2, %s18
      // Predicated region
      $region61: #{tpu_custom_call.1} parent=5 // pred_check
        %p473 = pneg %p472
      $region62: #{tpu_custom_call.1} parent=5 // pred_check_branch
        %475 = sbr.rel (%p473) target = $region64
      $region63: #{tpu_custom_call.1} parent=5 // pred_region
        %s476 = ssub.s32 %s18, 2
        // Predicated region
        $region65: #{tpu_custom_call.1} parent=63 // pred_check
          %p477 = pneg %p141
        $region66: #{tpu_custom_call.1} parent=63 // pred_check_branch
          %479 = sbr.rel (%p477) target = $region68
        $region67: #{tpu_custom_call.1} parent=63 // pred_region
          %s480 = sand.u32 %s126, 1
          %s481 = scalar_lea.sflag [#allocation5], %s480
          %s482 = sand.u32 %s126, 1
          %s483 = smul.addr %s482, 16
          %s484 = scalar_lea.vmem [#allocation9], %s483
          %486 = dma.done %s481, 256
        $region68: #{tpu_custom_call.1} parent=63 // pred_fallthru
          _
      $region64: #{tpu_custom_call.1} parent=5 // pred_fallthru
        _
    $region6: #{tpu_custom_call.1} parent=1 // loop_footer
      %s22 = sadd.s32 1, %s18
    $region7: #{tpu_custom_call.1} parent=1 // loop_footer_branch
      %17 = sbr.rel target = $region3
    $region8: #{tpu_custom_call.1} parent=1 // loop_exit
      _
    %487 = vsyncpa [#allocation4], 1
    %s488 = scalar_lea.sflag [#allocation4], 1
    %489 = vsyncpa %s488, 1
    %490 = vsyncpa [#allocation7], 1
    %s491 = scalar_lea.sflag [#allocation7], 1
    %492 = vsyncpa %s491, 1
    %493 = vsyncpa [#allocation5], 1
    %s494 = scalar_lea.sflag [#allocation5], 1
    %495 = vsyncpa %s494, 1

</llo_original>
